<compile_context>
chip_gen: v6e
topology: v6e:2x2x1
jax: 0.10.0
libtpu: 0.0.40
codegen_flags: <defaults>
</compile_context>

<pallas_src>
import numpy as np
import jax
import jax.numpy as jnp
from jax.experimental import pallas as pl
from jax.experimental.pallas import tpu as pltpu

STATE_DIM = 4
LANES = 128
# 128K lanes: per-step x DMA = 4*128K*4 B = 2 MiB (>> 0.35 us step overhead on
# every generation); padded double-buffered VMEM ~= 16 MiB < 32 MiB scoped limit.
DEFAULT_TILE_N = 128 * 1024


def _round_up(x: int, m: int) -> int:
    return ((x + m - 1) // m) * m


def _lqr_gain() -> np.ndarray:
    """Deterministically recompute the LQR gain K for the cart-pole linearization
    (same math as ct.lqr) by solving the CARE via the Hamiltonian eigen-decomposition."""
    mc, mp, l, g = 0.2, 0.5, 0.5, 9.80364
    A = np.array(
        [[0.0, 0.0, 1.0, 0.0],
         [0.0, 0.0, 0.0, 1.0],
         [0.0, mp * g / mc, 0.0, 0.0],
         [0.0, (mc + mp) * g / mc / l, 0.0, 0.0]], dtype=np.float64)
    B = np.array([[0.0], [0.0], [1.0 / mc], [1.0 / mc / l]], dtype=np.float64)
    Q = np.diag([1.0 / 20.0, mp * g * l, 0.5 * (mc + mp), 0.5 * mp * l]).astype(np.float64)
    Q[2, 3] = 0.5 * mp * l
    Q[3, 2] = Q[2, 3]
    R = 0.1 * np.eye(1)

    Rinv = np.linalg.inv(R)
    H = np.block([[A, -B @ Rinv @ B.T],
                  [-Q, -A.T]])
    w, V = np.linalg.eig(H)
    stable = V[:, w.real < 0.0]            # stable invariant subspace of the 8x8 Hamiltonian
    assert stable.shape[1] == STATE_DIM, "CARE solve: expected exactly 4 stable eigenvalues"
    V11 = stable[:STATE_DIM, :]
    V21 = stable[STATE_DIM:, :]
    S = np.real(V21 @ np.linalg.inv(V11))  # CARE solution
    K = Rinv @ B.T @ S                     # (1, 4) LQR gain
    return K.astype(np.float32)


def linear_ctrl_kernel(k_ref, x_ref, o_ref):
    """o = k0*x[0,:] + k1*x[1,:] + k2*x[2,:] + k3*x[3,:]   (sign already folded into k).

    k_ref: (STATE_DIM,)        f32 SMEM  -- gain scalars, negation pre-applied
    x_ref: (STATE_DIM, tile_n) f32 VMEM  -- batch tile of states
    o_ref: (1, tile_n)         f32 VMEM  -- control tile
    """
    o_ref[...] = (k_ref[0] * x_ref[0:1, :]
                  + k_ref[1] * x_ref[1:2, :]
                  + k_ref[2] * x_ref[2:3, :]
                  + k_ref[3] * x_ref[3:4, :])


def linear_ctrl_forward(neg_gain: jax.Array, x: jax.Array, *,
                        tile_n: int | None = None,
                        min_pallas_cols: int = 32 * 1024,
                        force_pallas: bool = False) -> jax.Array:
    """neg_gain: (STATE_DIM,); x: (STATE_DIM, N). Returns (1, N) = neg_gain @ x."""
    S, N = x.shape
    assert S == STATE_DIM and neg_gain.shape == (STATE_DIM,)

    if not force_pallas and N < min_pallas_cols:
        # Actual cart-pole use: tiny batches -> kernel-launch/tile overhead beats
        # the 8-FLOP/column work; let XLA fuse the matvec.
        return neg_gain[None, :] @ x

    if tile_n is None:
        tile_n = min(DEFAULT_TILE_N, _round_up(N, LANES))
    assert tile_n % LANES == 0

    cost = pl.CostEstimate(
        flops=8 * N,                                        # 4 mul + 3 add per column
        transcendentals=0,
        bytes_accessed=(STATE_DIM * N + N + STATE_DIM) * 4  # x in, u out, gain
    )

    return pl.pallas_call(
        linear_ctrl_kernel,
        out_shape=jax.ShapeDtypeStruct((1, N), jnp.float32),
        grid=(pl.cdiv(N, tile_n),),                          # no pad: last block masked
        in_specs=[
            pl.BlockSpec(memory_space=pltpu.MemorySpace.SMEM),    # whole (4,) gain in SMEM
            pl.BlockSpec((STATE_DIM, tile_n), lambda i: (0, i)),  # batch tile of x
        ],
        out_specs=pl.BlockSpec((1, tile_n), lambda i: (0, i)),    # lane-dense output tile
        compiler_params=pltpu.CompilerParams(
            dimension_semantics=("parallel",),        # v7x: shard batch tiles across 2 TCs
            vmem_limit_bytes=32 * 1024 * 1024,        # 128K tile's padded double-buffers fit on v5e too
        ),
        cost_estimate=cost,
    )(neg_gain, x)


if __name__ == "__main__":
    # Deterministic gain (parameter setup, plain numpy/JAX glue).
    K_np = _lqr_gain()                              # (1, 4)
    neg_gain = jnp.asarray(-K_np.reshape(-1))       # (4,): negation folded into the gain once

    # Small-but-ragged batch: 4 state dims x 1000 columns exercises multiple grid
    # steps plus the masked final partial block (1000 = 3*256 + 232).
    key = jax.random.PRNGKey(0)
    x = jax.random.normal(key, (STATE_DIM, 1000), dtype=jnp.float32)

    out = linear_ctrl_forward(neg_gain, x, tile_n=256, force_pallas=True)
    out = jax.block_until_ready(out)

    ref = -(K_np @ np.asarray(x))
    np.testing.assert_allclose(np.asarray(out), ref, rtol=1e-5, atol=1e-5)

    # Tiny-batch dispatch path (the real per-step ControlSystem use case).
    x_small = jax.random.normal(jax.random.PRNGKey(1), (STATE_DIM, 8), dtype=jnp.float32)
    out_small = jax.block_until_ready(linear_ctrl_forward(neg_gain, x_small))
    np.testing.assert_allclose(np.asarray(out_small), -(K_np @ np.asarray(x_small)),
                               rtol=1e-5, atol=1e-5)

    print("KERNEL_OK")
</pallas_src>

<mosaic_0001>
module attributes {stable_mosaic.version = 11 : i64} {
  func.func @linear_ctrl_kernel(%arg0: i32, %arg1: memref<4xf32, #tpu.memory_space<smem>>, %arg2: memref<4x256xf32, #tpu.memory_space<vmem>>, %arg3: memref<1x256xf32, #tpu.memory_space<vmem>>) attributes {dimension_semantics = [#tpu.dimension_semantics<parallel>], iteration_bounds = array<i64: 4>, scalar_prefetch = 0 : i64, scratch_operands = 0 : i64, tpu.core_type = #tpu.core_type<tc>, window_params = [{transform_indices = @transform_0, window_bounds = array<i64: 4>}, {transform_indices = @transform_1, window_bounds = array<i64: 4, 256>}, {transform_indices = @transform_2, window_bounds = array<i64: 1, 256>}]} {
    %c0 = arith.constant 0 : index
    %0 = memref.load %arg1[%c0] : memref<4xf32, #tpu.memory_space<smem>>
    %c0_0 = arith.constant 0 : index
    %c0_1 = arith.constant 0 : index
    %1 = vector.load %arg2[%c0_0, %c0_1] : memref<4x256xf32, #tpu.memory_space<vmem>>, vector<1x256xf32>
    %2 = vector.broadcast %0 : f32 to vector<1x256xf32>
    %3 = arith.mulf %2, %1 : vector<1x256xf32>
    %c1 = arith.constant 1 : index
    %4 = memref.load %arg1[%c1] : memref<4xf32, #tpu.memory_space<smem>>
    %c1_2 = arith.constant 1 : index
    %c0_3 = arith.constant 0 : index
    %5 = vector.load %arg2[%c1_2, %c0_3] : memref<4x256xf32, #tpu.memory_space<vmem>>, vector<1x256xf32>
    %6 = vector.broadcast %4 : f32 to vector<1x256xf32>
    %7 = arith.mulf %6, %5 : vector<1x256xf32>
    %8 = arith.addf %3, %7 : vector<1x256xf32>
    %c2 = arith.constant 2 : index
    %9 = memref.load %arg1[%c2] : memref<4xf32, #tpu.memory_space<smem>>
    %c2_4 = arith.constant 2 : index
    %c0_5 = arith.constant 0 : index
    %10 = vector.load %arg2[%c2_4, %c0_5] : memref<4x256xf32, #tpu.memory_space<vmem>>, vector<1x256xf32>
    %11 = vector.broadcast %9 : f32 to vector<1x256xf32>
    %12 = arith.mulf %11, %10 : vector<1x256xf32>
    %13 = arith.addf %8, %12 : vector<1x256xf32>
    %c3 = arith.constant 3 : index
    %14 = memref.load %arg1[%c3] : memref<4xf32, #tpu.memory_space<smem>>
    %c3_6 = arith.constant 3 : index
    %c0_7 = arith.constant 0 : index
    %15 = vector.load %arg2[%c3_6, %c0_7] : memref<4x256xf32, #tpu.memory_space<vmem>>, vector<1x256xf32>
    %16 = vector.broadcast %14 : f32 to vector<1x256xf32>
    %17 = arith.mulf %16, %15 : vector<1x256xf32>
    %18 = arith.addf %13, %17 : vector<1x256xf32>
    %c0_8 = arith.constant 0 : index
    %c0_9 = arith.constant 0 : index
    %19 = vector.load %arg3[%c0_8, %c0_9] : memref<1x256xf32, #tpu.memory_space<vmem>>, vector<1x256xf32>
    tpu.vector_store %arg3[%c0_8, %c0_9], %18 {strides = array<i32>} : memref<1x256xf32, #tpu.memory_space<vmem>>, vector<1x256xf32>,
    return
  }
  func.func @transform_0(%arg0: i32) -> i32 {
    %c0_i32 = arith.constant 0 : i32
    %c0_i32_0 = arith.constant 0 : i32
    return %c0_i32 : i32
  }
  func.func @transform_1(%arg0: i32) -> (i32, i32) {
    %c0_i32 = arith.constant 0 : i32
    %c0_i32_0 = arith.constant 0 : i32
    return %c0_i32, %arg0 : i32, i32
  }
  func.func @transform_2(%arg0: i32) -> (i32, i32) {
    %c0_i32 = arith.constant 0 : i32
    %c0_i32_0 = arith.constant 0 : i32
    return %c0_i32, %arg0 : i32, i32
  }
}

</mosaic_0001>

<llo_original>
// kernel: tpu_custom_call.1
$region0: #{tpu_custom_call.1}
  #allocation0 [shape = 'u32[]', space=smem, size = 0x4, offset = 0x4, fixed_abs, tag = 'smem constant byte address 0x4 - core index']
  #allocation1 [shape = 'u32[144,128]{1,0:T(1,128)}', space=vmem, size = 0x12000, scoped, tag = 'internal scratch']
  %s0 = inlined_call_operand.hbm [shape: f32[4], index: 0, kind: input, shape index: {}]
  %s1 = inlined_call_operand.hbm [shape: f32[4,1000], index: 1, kind: input, shape index: {}]
  %s2 = inlined_call_operand.hbm [shape: f32[1,1000], index: 2, kind: output, shape index: {}]
  %s3 = sld [smem:[#allocation0]]
  $region49: #{tpu_custom_call.1} parent=0
    _
  %s5 = ssub.s32 1, %s3
  %s6 = scalar_select 0, %s5, %s3
  $region1: #{tpu_custom_call.1} parent=0
    #allocation2 [shape = 'u8[512]{0}', space=smem, size = 0x200, scoped, tag = 'input window, operand 0, single buffered']
    #allocation3 [shape = 's32[2]{0}', space=sflag, size = 0x8, scoped, tag = 'scoped memory for tpu_custom_call.1']
    #allocation4 [shape = 's32[2]{0}', space=sflag, size = 0x8, scoped, tag = 'scoped memory for tpu_custom_call.1']
    #allocation5 [shape = 's32[2]{0}', space=sflag, size = 0x8, scoped, tag = 'scoped memory for tpu_custom_call.1']
    #allocation6 [shape = 'u8[8192]{0}', space=vmem, size = 0x2000, scoped, tag = 'input window, operand 1']
    #allocation7 [shape = 'u8[2048]{0}', space=vmem, size = 0x800, scoped, tag = 'output window, operand 0']
    %7 = vsyncpa [#allocation5], 0
    %8 = vsyncpa [#allocation3], 0
    %s9 = scalar_lea.sflag [#allocation3], 1
    %10 = vsyncpa %s9, 0
    %11 = vsyncpa [#allocation4], 0
    %s12 = scalar_lea.sflag [#allocation4], 1
    %13 = vsyncpa %s12, 0
    loop: start=0, step=1, limit=6
    $region2: #{tpu_custom_call.1} parent=1 // loop_pre_header
      _
    $region3: #{tpu_custom_call.1} parent=1 // loop_header
      %s15 = sphi 0, %s19
      %p16 = scmp.ge.s32.totalorder %s15, 6
      %s23 = sphi 0, %s23
      %s25 = sphi 0, %s23
      %s26 = sphi 0, %s25
      %s40 = sphi 0, %s26
      %s46 = sphi 0, %s48
      %s49 = sphi 0, %s46
      %s50 = sphi 0, %s49
      %s66 = sphi 0, %s50
      %s72 = sphi 0, %s74
      %s75 = sphi 0, %s72
      %s76 = sphi 0, %s75
      %s92 = sphi 0, %s76
    $region4: #{tpu_custom_call.1} parent=1 // loop_header_branch
      %18 = sbr.rel (%p16) target = $region8
    $region5: #{tpu_custom_call.1} parent=1 // loop_body
      %s20 = ssub.s32 %s15, 1
      %s21 = ssub.s32 %s15, 2
      %s22 = sadd.s32 %s15, 1
      %s24 = sadd.s32 %s23, 1
      %p27 = scmp.eq.s32.totalorder %s15, 3
      %p28 = scmp.ne.s32.totalorder %s23, %s25
      %p29 = scmp.eq.s32.totalorder %s15, 0
      %p30 = por %p28, %p29
      %p31 = scmp.ne.s32.totalorder %s23, %s25
      %p32 = scmp.eq.s32.totalorder %s20, 3
      %p33 = por %p31, %p32
      %p34 = scmp.ne.s32.totalorder %s25, %s26
      %p35 = scmp.eq.s32.totalorder %s20, 0
      %p36 = por %p34, %p35
      %p37 = scmp.ne.s32.totalorder %s25, %s26
      %p38 = scmp.eq.s32.totalorder %s21, 3
      %p39 = por %p37, %p38
      %p41 = scmp.ne.s32.totalorder %s26, %s40
      %p42 = scmp.eq.s32.totalorder %s21, 0
      %p43 = por %p41, %p42
      %s44 = ssub.s32 %s15, %s22
      %p45 = scmp.eq.s32.totalorder %s44, 0
      %s47 = sadd.s32 %s46, 1
      %s48 = scalar_select %p45, %s46, %s47
      %p51 = pneg %p45
      %p52 = scmp.eq.s32.totalorder %s15, 3
      %p53 = por %p51, %p52
      %p54 = scmp.ne.s32.totalorder %s46, %s49
      %p55 = scmp.eq.s32.totalorder %s15, 0
      %p56 = por %p54, %p55
      %p57 = scmp.ne.s32.totalorder %s46, %s49
      %p58 = scmp.eq.s32.totalorder %s20, 3
      %p59 = por %p57, %p58
      %p60 = scmp.ne.s32.totalorder %s49, %s50
      %p61 = scmp.eq.s32.totalorder %s20, 0
      %p62 = por %p60, %p61
      %p63 = scmp.ne.s32.totalorder %s49, %s50
      %p64 = scmp.eq.s32.totalorder %s21, 3
      %p65 = por %p63, %p64
      %p67 = scmp.ne.s32.totalorder %s50, %s66
      %p68 = scmp.eq.s32.totalorder %s21, 0
      %p69 = por %p67, %p68
      %s70 = ssub.s32 %s15, %s22
      %p71 = scmp.eq.s32.totalorder %s70, 0
      %s73 = sadd.s32 %s72, 1
      %s74 = scalar_select %p71, %s72, %s73
      %p77 = pneg %p71
      %p78 = scmp.eq.s32.totalorder %s15, 3
      %p79 = por %p77, %p78
      %p80 = scmp.ne.s32.totalorder %s72, %s75
      %p81 = scmp.eq.s32.totalorder %s15, 0
      %p82 = por %p80, %p81
      %p83 = scmp.ne.s32.totalorder %s72, %s75
      %p84 = scmp.eq.s32.totalorder %s20, 3
      %p85 = por %p83, %p84
      %p86 = scmp.ne.s32.totalorder %s75, %s76
      %p87 = scmp.eq.s32.totalorder %s20, 0
      %p88 = por %p86, %p87
      %p89 = scmp.ne.s32.totalorder %s75, %s76
      %p90 = scmp.eq.s32.totalorder %s21, 3
      %p91 = por %p89, %p90
      %p93 = scmp.ne.s32.totalorder %s76, %s92
      %p94 = scmp.eq.s32.totalorder %s21, 0
      %p95 = por %p93, %p94
      %p96 = scmp.le.s32.totalorder 1, %s15
      %p97 = scmp.lt.s32.totalorder %s15, 5
      %p98 = pnand %p96, %p97
      %p99 = pneg %p98
      // Predicated region
      $region9: #{tpu_custom_call.1} parent=5 // pred_check
        _
      $region10: #{tpu_custom_call.1} parent=5 // pred_check_branch
        %101 = sbr.rel (%p98) target = $region12
      $region11: #{tpu_custom_call.1} parent=5 // pred_region
        %s102 = ssub.s32 %s15, 1
        // Predicated region
        $region13: #{tpu_custom_call.1} parent=11 // pred_check
          %p103 = pneg %p36
        $region14: #{tpu_custom_call.1} parent=11 // pred_check_branch
          %105 = sbr.rel (%p103) target = $region16
        $region15: #{tpu_custom_call.1} parent=11 // pred_region
          %s107 = ssub.s32 16, 16
          %108 = vsyncadd [#allocation5], %s107
          %111 = dma.hbm_to_smem %s0, 16, [#allocation2], [#allocation5]
        $region16: #{tpu_custom_call.1} parent=11 // pred_fallthru
          _
      $region12: #{tpu_custom_call.1} parent=5 // pred_fallthru
        _
      %p112 = scmp.lt.s32.totalorder %s15, 4
      // Predicated region
      $region17: #{tpu_custom_call.1} parent=5 // pred_check
        %p113 = pneg %p112
      $region18: #{tpu_custom_call.1} parent=5 // pred_check_branch
        %115 = sbr.rel (%p113) target = $region20
      $region19: #{tpu_custom_call.1} parent=5 // pred_region
        // Predicated region
        $region21: #{tpu_custom_call.1} parent=19 // pred_check
          %p116 = pneg %p56
        $region22: #{tpu_custom_call.1} parent=19 // pred_check_branch
          %118 = sbr.rel (%p116) target = $region24
        $region23: #{tpu_custom_call.1} parent=19 // pred_region
          %s119 = sand.u32 %s46, 1
          %s120 = scalar_lea.sflag [#allocation3], %s119
          %s121 = sand.u32 %s46, 1
          %s122 = smul.addr %s121, 8
          %s123 = scalar_lea.vmem [#allocation6], %s122
          %s124 = smul.u32 2, %s15
          %s126 = ssub.s32 128, 128
          %127 = vsyncadd %s120, %s126
          %s128 = smul.addr %s124, 64
          %s129 = scalar_lea.hbm %s1, %s128
          %s131 = sshll.u32 %s123, 4
          %s132 = int_to_ptr.vmem [resolvable:$true] %s131
          %134 = dma.hbm_to_vmem [thread:$0]  %s129, 128, %s132, %s120
        $region24: #{tpu_custom_call.1} parent=19 // pred_fallthru
          _
      $region20: #{tpu_custom_call.1} parent=5 // pred_fallthru
        _
      %p135 = scmp.le.s32.totalorder 1, %s15
      %p136 = scmp.lt.s32.totalorder %s15, 5
      %p137 = pnand %p135, %p136
      %p138 = pneg %p137
      // Predicated region
      $region25: #{tpu_custom_call.1} parent=5 // pred_check
        _
      $region26: #{tpu_custom_call.1} parent=5 // pred_check_branch
        %140 = sbr.rel (%p137) target = $region28
      $region27: #{tpu_custom_call.1} parent=5 // pred_region
        %s141 = ssub.s32 %s15, 1
        // Predicated region
        $region29: #{tpu_custom_call.1} parent=27 // pred_check
          %p142 = pneg %p36
        $region30: #{tpu_custom_call.1} parent=27 // pred_check_branch
          %144 = sbr.rel (%p142) target = $region32
        $region31: #{tpu_custom_call.1} parent=27 // pred_region
          %145 = dma.done [#allocation5], 16
        $region32: #{tpu_custom_call.1} parent=27 // pred_fallthru
          _
        %s146 = sand.u32 %s49, 1
        %s147 = scalar_lea.sflag [#allocation3], %s146
        %s148 = sand.u32 %s49, 1
        %s149 = smul.addr %s148, 8
        %s150 = scalar_lea.vmem [#allocation6], %s149
        // Predicated region
        $region33: #{tpu_custom_call.1} parent=27 // pred_check
          %p151 = pneg %p62
        $region34: #{tpu_custom_call.1} parent=27 // pred_check_branch
          %153 = sbr.rel (%p151) target = $region36
        $region35: #{tpu_custom_call.1} parent=27 // pred_region
          %154 = dma.done %s147, 128
        $region36: #{tpu_custom_call.1} parent=27 // pred_fallthru
          _
        %155 = sfence
        %p156 = pneg %p36
        %p157 = pneg %p33
        %s158 = sand.u32 %s49, 1
        %s159 = scalar_lea.sflag [#allocation3], %s158
        %s160 = sand.u32 %s49, 1
        %s161 = smul.addr %s160, 8
        %s162 = scalar_lea.vmem [#allocation6], %s161
        %p163 = pneg %p62
        %p164 = pneg %p59
        %p165 = pneg %p88
        %p166 = pneg %p85
        %s167 = sand.u32 %s75, 1
        %s168 = scalar_lea.sflag [#allocation4], %s167
        %s169 = sand.u32 %s75, 1
        %s170 = smul.addr %s169, 2
        %s171 = scalar_lea.vmem [#allocation7], %s170
        %s172 = smul.u32 2, %s20
        %s173 = smul.u32 2, %s20
        %s174 = sld [smem:[#allocation2]]
        %v175 = vld [vmem:[%s150] ss:$4 sm:$0x3]
        %v176 = vstv %s174
        %v177 = vmul.f32 %v176, %v175
        %s178 = sld [smem:[#allocation2 + $0x1]]
        %s179 = scalar_lea.vmem %s150, 1 [#allocation6]
        %v180 = vld [vmem:[%s179] ss:$4 sm:$0x3]
        %v181 = vstv %s178
        %v182 = vmul.f32 %v181, %v180
        %v183 = vadd.f32 %v177, %v182
        %s184 = sld [smem:[#allocation2 + $0x2]]
        %s185 = scalar_lea.vmem %s150, 2 [#allocation6]
        %v186 = vld [vmem:[%s185] ss:$4 sm:$0x3]
        %v187 = vstv %s184
        %v188 = vmul.f32 %v187, %v186
        %v189 = vadd.f32 %v183, %v188
        %s190 = sld [smem:[#allocation2 + $0x3]]
        %s191 = scalar_lea.vmem %s150, 3 [#allocation6]
        %v192 = vld [vmem:[%s191] ss:$4 sm:$0x3]
        %v193 = vstv %s190
        %v194 = vmul.f32 %v193, %v192
        %v195 = vadd.f32 %v189, %v194
        %v196 = vlaneseq
        %vm197 = vcmp.ge.s32.totalorder %v196, 0
        %vm198 = vcmp.lt.s32.totalorder %v196, 256
        %vm199 = vmand %vm197, %vm198
        %200 = vst.msk [vmem:[%s171] sm:$0x3] %vm199, %v195
        %s201 = sand.u32 %s75, 1
        %s202 = scalar_lea.sflag [#allocation4], %s201
        %s203 = sand.u32 %s75, 1
        %s204 = smul.addr %s203, 2
        %s205 = scalar_lea.vmem [#allocation7], %s204
        // Predicated region
        $region37: #{tpu_custom_call.1} parent=27 // pred_check
          %p206 = pneg %p85
        $region38: #{tpu_custom_call.1} parent=27 // pred_check_branch
          %208 = sbr.rel (%p206) target = $region40
        $region39: #{tpu_custom_call.1} parent=27 // pred_region
          %s209 = smul.u32 2, %s20
          %s211 = ssub.s32 32, 32
          %212 = vsyncadd %s202, %s211
          %s213 = smul.addr %s209, 16
          %s214 = scalar_lea.hbm %s2, %s213
          %s216 = sshll.u32 %s205, 4
          %s217 = int_to_ptr.vmem [resolvable:$true] %s216
          %219 = dma.vmem_to_hbm [thread:$0]  %s217, 32, %s214, %s202
        $region40: #{tpu_custom_call.1} parent=27 // pred_fallthru
          _
      $region28: #{tpu_custom_call.1} parent=5 // pred_fallthru
        _
      %p220 = scmp.le.s32.totalorder 2, %s15
      // Predicated region
      $region41: #{tpu_custom_call.1} parent=5 // pred_check
        %p221 = pneg %p220
      $region42: #{tpu_custom_call.1} parent=5 // pred_check_branch
        %223 = sbr.rel (%p221) target = $region44
      $region43: #{tpu_custom_call.1} parent=5 // pred_region
        %s224 = ssub.s32 %s15, 2
        // Predicated region
        $region45: #{tpu_custom_call.1} parent=43 // pred_check
          %p225 = pneg %p91
        $region46: #{tpu_custom_call.1} parent=43 // pred_check_branch
          %227 = sbr.rel (%p225) target = $region48
        $region47: #{tpu_custom_call.1} parent=43 // pred_region
          %s228 = sand.u32 %s76, 1
          %s229 = scalar_lea.sflag [#allocation4], %s228
          %s230 = sand.u32 %s76, 1
          %s231 = smul.addr %s230, 2
          %s232 = scalar_lea.vmem [#allocation7], %s231
          %233 = dma.done %s229, 32
        $region48: #{tpu_custom_call.1} parent=43 // pred_fallthru
          _
      $region44: #{tpu_custom_call.1} parent=5 // pred_fallthru
        _
    $region6: #{tpu_custom_call.1} parent=1 // loop_footer
      %s19 = sadd.s32 1, %s15
    $region7: #{tpu_custom_call.1} parent=1 // loop_footer_branch
      %14 = sbr.rel target = $region3
    $region8: #{tpu_custom_call.1} parent=1 // loop_exit
      _
    %234 = vsyncpa [#allocation3], 1
    %s235 = scalar_lea.sflag [#allocation3], 1
    %236 = vsyncpa %s235, 1
    %237 = vsyncpa [#allocation4], 1
    %s238 = scalar_lea.sflag [#allocation4], 1
    %239 = vsyncpa %s238, 1
    %240 = vsyncpa [#allocation5], 1
    %s241 = scalar_lea.sflag [#allocation5], 1
    %242 = vsyncpa %s241, 1

</llo_original>
